<compile_context>
chip_gen: v7x
topology: tpu7x:2x2x1
jax: 0.10.0
libtpu: 0.0.40
codegen_flags: <defaults>
</compile_context>

<pallas_src>
import math
from functools import partial
from typing import NamedTuple

import jax
import jax.numpy as jnp
from jax import lax
from jax.experimental import pallas as pl
from jax.experimental.pallas import tpu as pltpu

# torch.nn.RMSNorm(eps=None) uses torch.finfo(float32).eps
_RMS_EPS = 1.1920928955078125e-07
_SQRT_2 = math.sqrt(2.0)


def _gelu_exact(x):
    # F.gelu default (approximate='none') — erf-based.
    return 0.5 * x * (1.0 + lax.erf(x / _SQRT_2))


# --------------------------------------------------------------------------- #
# Kernel body: one (row_block, ff_block) grid step.
# --------------------------------------------------------------------------- #
def _mlp_kernel(x_ref, nw_ref, wug_ref, bug_ref, wd_ref, bd_ref, o_ref,
                xn_ref, acc_ref, *, use_geglu: bool, tf: int):
    """
    x_ref   : (bn, d_model) f32        -- resident across the ff axis
    nw_ref  : (1, d_model)  f32        -- RMSNorm weight
    wug_ref : (d_model, ug_cols) bf16  -- [up | gate] weight tile (or just up)
    bug_ref : (1, ug_cols)  f32        -- matching bias tile
    wd_ref  : (tf, d_model) bf16       -- down-proj weight tile
    bd_ref  : (1, d_model)  f32        -- down-proj bias
    o_ref   : (bn, d_model) f32        -- output row block (written at ff==last)
    xn_ref  : (bn, d_model) bf16 VMEM scratch -- RMSNorm(x), computed once per row block
    acc_ref : (bn, d_model) f32  VMEM scratch -- down-projection accumulator
    """
    j = pl.program_id(1)

    @pl.when(j == 0)
    def _init():
        x = x_ref[...].astype(jnp.float32)
        ms = jnp.mean(x * x, axis=-1, keepdims=True)
        xn = x * lax.rsqrt(ms + _RMS_EPS) * nw_ref[...]
        xn_ref[...] = xn.astype(xn_ref.dtype)
        acc_ref[...] = jnp.zeros_like(acc_ref)

    # Fused up(+gate) projection on the MXU: bf16 operands, f32 accumulation.
    ug = jnp.dot(xn_ref[...], wug_ref[...],
                 preferred_element_type=jnp.float32) + bug_ref[...]
    if use_geglu:
        t = ug[:, :tf] * ug[:, tf:]          # up * gate (f32)
    else:
        t = ug
    h = _gelu_exact(t)                       # gelu AFTER the product (matches torch code)

    # Down-projection partial sum for this d_ff tile.
    acc_ref[...] += jnp.dot(h.astype(wd_ref.dtype), wd_ref[...],
                            preferred_element_type=jnp.float32)

    @pl.when(j == pl.num_programs(1) - 1)
    def _finalize():
        x = x_ref[...].astype(jnp.float32)
        o_ref[...] = (x + acc_ref[...] + bd_ref[...]).astype(o_ref.dtype)


# --------------------------------------------------------------------------- #
# Configuration / packing (done ONCE, outside the per-call path).
# --------------------------------------------------------------------------- #
class MLPConfig(NamedTuple):
    d_model: int
    d_ff: int            # original (unpadded) d_ff
    d_ff_pad: int        # d_ff after zero-padding to nf * tf
    tf: int              # d_ff tile size
    nf: int              # number of d_ff tiles
    ug_cols: int         # columns of fused [up|gate] tile (2*tf or tf)
    use_geglu: bool
    block_rows: int
    single_buf_rows: bool
    vmem_cap: int


def _device_vmem_capacity():
    cap = 128 << 20
    try:
        info = pltpu.get_tpu_info()
        cap = int(getattr(info, "vmem_capacity_bytes", cap))
    except Exception:
        pass
    return cap


def _default_blocks(vmem_cap):
    """(block_rows, block_ff, single_buffer_row_blocks) derived from VMEM capacity."""
    if vmem_cap >= (100 << 20):
        # v5e / v6e: 128 MiB VMEM — large row blocks so weight streaming is amortized.
        return 512, 1024, False
    # v7x-class: 64 MiB.  Single-buffer the row-resident x/out blocks (their block
    # index only changes once per nf inner steps) to afford a larger bn.
    if hasattr(pl, "Buffered"):
        return 384, 512, True
    return 256, 512, False


def _choose_ff_tile(d_ff, block_ff):
    """Pick tf and the (possibly zero-padded) d_ff it tiles."""
    if d_ff <= block_ff:
        return d_ff, d_ff                       # single tile (block == full dim is legal)
    cap = max((min(block_ff, d_ff) // 128) * 128, 128)
    k = cap
    while k >= 128:                             # largest multiple-of-128 divisor <= block_ff
        if d_ff % k == 0:
            return k, d_ff
        k -= 128
    d_ff_pad = ((d_ff + cap - 1) // cap) * cap  # zero-pad (padded cols contribute 0)
    return cap, d_ff_pad


def pack_mlp_params(params, *, use_geglu, block_rows=None, block_ff=None,
                    weight_dtype=jnp.bfloat16):
    """Pre-pack / pre-cast weights once.  Returns (packed_arrays, static_config)."""
    d_model, d_ff = params["w_up"].shape
    vmem_cap = _device_vmem_capacity()
    def_rows, def_ff, single_buf = _default_blocks(vmem_cap)
    block_rows = def_rows if block_rows is None else block_rows
    block_ff = def_ff if block_ff is None else block_ff

    tf, d_ff_pad = _choose_ff_tile(d_ff, block_ff)
    nf = d_ff_pad // tf

    w_up = params["w_up"].astype(jnp.float32)
    b_up = params["b_up"].astype(jnp.float32)
    w_down = params["w_down"].astype(jnp.float32)
    b_down = params["b_down"].astype(jnp.float32)
    if use_geglu:
        w_g = params["w_g"].astype(jnp.float32)
        b_g = params["b_g"].astype(jnp.float32)

    if d_ff_pad != d_ff:
        pad = d_ff_pad - d_ff
        w_up = jnp.pad(w_up, ((0, 0), (0, pad)))
        b_up = jnp.pad(b_up, ((0, pad),))
        w_down = jnp.pad(w_down, ((0, pad), (0, 0)))
        if use_geglu:
            w_g = jnp.pad(w_g, ((0, 0), (0, pad)))
            b_g = jnp.pad(b_g, ((0, pad),))

    # Store as (nf, d_model, ug_cols) so each grid step's tile is one contiguous slab.
    wu_t = w_up.reshape(d_model, nf, tf).transpose(1, 0, 2)        # (nf, d_model, tf)
    if use_geglu:
        wg_t = w_g.reshape(d_model, nf, tf).transpose(1, 0, 2)
        w_ug = jnp.concatenate([wu_t, wg_t], axis=2)               # (nf, d_model, 2*tf)
        b_ug = jnp.concatenate([b_up.reshape(nf, tf),
                                b_g.reshape(nf, tf)], axis=1).reshape(1, nf * 2 * tf)
        ug_cols = 2 * tf
    else:
        w_ug = wu_t                                                 # (nf, d_model, tf)
        b_ug = b_up.reshape(1, nf * tf)
        ug_cols = tf

    packed = {
        "norm_w": params["norm_w"].reshape(1, d_model).astype(jnp.float32),
        "w_ug": w_ug.astype(weight_dtype),
        "b_ug": b_ug.astype(jnp.float32),
        "w_down": w_down.astype(weight_dtype),                      # (d_ff_pad, d_model)
        "b_down": b_down.reshape(1, d_model).astype(jnp.float32),
    }
    cfg = MLPConfig(d_model, d_ff, d_ff_pad, tf, nf, ug_cols, use_geglu,
                    block_rows, single_buf, vmem_cap)
    return packed, cfg


def _choose_bn(n, block_rows):
    bn = min(block_rows, n)
    if bn == n and n >= 512:
        # Expose at least 2 row blocks so dual-TC parts (v7x) keep both cores busy.
        bn = ((n + 15) // 16) * 8
    if bn < n:
        bn = max((bn // 8) * 8, 8)   # sublane-aligned when not the full dim
    return min(bn, n)


def _vmem_limit_bytes(cfg, bn):
    d_model, tf, ug_cols = cfg.d_model, cfg.tf, cfg.ug_cols
    row_bufs = 1 if cfg.single_buf_rows else 2
    est = 0
    est += 2 * row_bufs * bn * d_model * 4     # x block + out block
    est += 2 * d_model * ug_cols * 2           # [up|gate] weight tile (bf16, double-buffered)
    est += 2 * ug_cols * 4                     # [up|gate] bias tile
    est += 2 * tf * d_model * 2                # down-proj weight tile (bf16, double-buffered)
    est += 4 * d_model * 4                     # norm weight + down bias
    est += bn * d_model * 2                    # x_norm scratch (bf16)
    est += bn * d_model * 4                    # f32 accumulator scratch
    limit = est + est // 2 + (8 << 20)         # 1.5x + compiler-scratch margin
    limit = max(limit, 32 << 20)
    return int(min(limit, int(cfg.vmem_cap * 0.9)))   # never exceed physical capacity


# --------------------------------------------------------------------------- #
# Forward pass (call under jax.jit with cfg bound via functools.partial).
# --------------------------------------------------------------------------- #
def transformer_mlp_forward(x, packed, *, cfg: MLPConfig):
    """x: (batch, seq, d_model) float32.  Returns same shape/dtype."""
    batch, seq, d_model = x.shape
    assert d_model == cfg.d_model
    n = batch * seq
    x2 = x.reshape(n, d_model)

    bn = _choose_bn(n, cfg.block_rows)
    tf, nf, ug_cols = cfg.tf, cfg.nf, cfg.ug_cols

    row_kwargs = {}
    if cfg.single_buf_rows and hasattr(pl, "Buffered"):
        # x / out block index only changes on the outer (row) axis -> one buffer is
        # enough; the exposed DMA happens once per nf inner steps (negligible) and the
        # freed VMEM pays for a larger bn on 64 MiB parts.
        row_kwargs = dict(pipeline_mode=pl.Buffered(1))
    x_spec = pl.BlockSpec((bn, d_model), lambda i, j: (i, 0), **row_kwargs)
    out_spec = pl.BlockSpec((bn, d_model), lambda i, j: (i, 0), **row_kwargs)

    grid = (pl.cdiv(n, bn), nf)    # rows (parallel) x ff tiles (arbitrary, reduction last)

    kernel = partial(_mlp_kernel, use_geglu=cfg.use_geglu, tf=tf)

    out = pl.pallas_call(
        kernel,
        out_shape=jax.ShapeDtypeStruct((n, d_model), x.dtype),
        grid_spec=pltpu.PrefetchScalarGridSpec(
            num_scalar_prefetch=0,
            grid=grid,
            in_specs=[
                x_spec,                                                        # x rows
                pl.BlockSpec((1, d_model), lambda i, j: (0, 0)),               # norm_w
                pl.BlockSpec((None, d_model, ug_cols), lambda i, j: (j, 0, 0)),  # [up|gate] W tile
                pl.BlockSpec((1, ug_cols), lambda i, j: (0, j)),               # [up|gate] b tile
                pl.BlockSpec((tf, d_model), lambda i, j: (j, 0)),              # down W tile
                pl.BlockSpec((1, d_model), lambda i, j: (0, 0)),               # down bias
            ],
            out_specs=out_spec,
            scratch_shapes=[
                pltpu.VMEM((bn, d_model), packed["w_ug"].dtype),  # x_norm (reused over ff)
                pltpu.VMEM((bn, d_model), jnp.float32),           # down-proj accumulator
            ],
        ),
        compiler_params=pltpu.CompilerParams(
            dimension_semantics=("parallel", "arbitrary"),
            vmem_limit_bytes=_vmem_limit_bytes(cfg, bn),
        ),
    )(x2, packed["norm_w"], packed["w_ug"], packed["b_ug"],
      packed["w_down"], packed["b_down"])

    return out.reshape(batch, seq, d_model)


# --------------------------------------------------------------------------- #
# Parameter init + references (for the self-test).
# --------------------------------------------------------------------------- #
def init_params(key, d_model, d_ff, use_geglu):
    """Deterministic init matching the torch module's parameter shapes.
    Linear weights stored pre-transposed as (d_in, d_out), f32."""
    ks = jax.random.split(key, 6)

    def linear(kw, kb, d_in, d_out):
        bound = 1.0 / math.sqrt(d_in)
        w = jax.random.uniform(kw, (d_in, d_out), jnp.float32, -bound, bound)
        b = jax.random.uniform(kb, (d_out,), jnp.float32, -bound, bound)
        return w, b

    w_up, b_up = linear(ks[0], ks[1], d_model, d_ff)
    w_down, b_down = linear(ks[2], ks[3], d_ff, d_model)
    params = {
        "w_up": w_up, "b_up": b_up,
        "w_down": w_down, "b_down": b_down,
        "norm_w": jnp.ones((d_model,), jnp.float32),   # RMSNorm weight init = ones
    }
    if use_geglu:
        w_g, b_g = linear(ks[4], ks[5], d_model, d_ff)
        params["w_g"] = w_g
        params["b_g"] = b_g
    return params


def _reference_f32(x, params, use_geglu):
    # Pure-f32 reference (matches the torch module numerics).
    ms = jnp.mean(x * x, axis=-1, keepdims=True)
    xn = x * lax.rsqrt(ms + _RMS_EPS) * params["norm_w"]
    t = xn @ params["w_up"] + params["b_up"]
    if use_geglu:
        t = t * (xn @ params["w_g"] + params["b_g"])
    t = _gelu_exact(t)
    return x + (t @ params["w_down"] + params["b_down"])


def _reference_mixed(x, params, use_geglu):
    # Mirrors the kernel's bf16-operand / f32-accumulation matmuls.
    ms = jnp.mean(x * x, axis=-1, keepdims=True)
    xn = (x * lax.rsqrt(ms + _RMS_EPS) * params["norm_w"]).astype(jnp.bfloat16)
    up = jnp.dot(xn, params["w_up"].astype(jnp.bfloat16),
                 preferred_element_type=jnp.float32) + params["b_up"]
    if use_geglu:
        gate = jnp.dot(xn, params["w_g"].astype(jnp.bfloat16),
                       preferred_element_type=jnp.float32) + params["b_g"]
        t = up * gate
    else:
        t = up
    h = _gelu_exact(t).astype(jnp.bfloat16)
    down = jnp.dot(h, params["w_down"].astype(jnp.bfloat16),
                   preferred_element_type=jnp.float32) + params["b_down"]
    return x + down


if __name__ == "__main__":
    key = jax.random.PRNGKey(0)

    # (batch, seq, d_model, d_ff, use_geglu, block_rows_override, block_ff_override)
    cases = [
        (2, 8, 32, 64, True, None, None),    # single ff tile, GEGLU
        (2, 8, 32, 64, False, None, None),   # single ff tile, plain GELU
        (2, 24, 128, 256, True, 16, 128),    # nf=2 streaming path + 3 row blocks
    ]

    for (batch, seq, d_model, d_ff, use_geglu, brows, bff) in cases:
        kx, kp, key = jax.random.split(key, 3)
        x = jax.random.normal(kx, (batch, seq, d_model), jnp.float32)
        params = init_params(kp, d_model, d_ff, use_geglu)

        packed, cfg = pack_mlp_params(params, use_geglu=use_geglu,
                                      block_rows=brows, block_ff=bff)
        fwd = jax.jit(partial(transformer_mlp_forward, cfg=cfg))
        out = fwd(x, packed)
        jax.block_until_ready(out)

        assert out.shape == x.shape and out.dtype == x.dtype

        ref_mp = _reference_mixed(x, params, use_geglu)
        ref_32 = _reference_f32(x, params, use_geglu)
        case = (batch, seq, d_model, d_ff, use_geglu)
        assert jnp.allclose(out, ref_mp, atol=3e-3, rtol=3e-3), \
            f"mismatch vs mixed-precision reference, case={case}"
        assert jnp.allclose(out, ref_32, atol=5e-2, rtol=5e-2), \
            f"mismatch vs f32 reference, case={case}"

    print("KERNEL_OK")
</pallas_src>

<mosaic_0001>
module attributes {stable_mosaic.version = 11 : i64} {
  func.func @_mlp_kernel(%arg0: i32, %arg1: i32, %arg2: memref<16x32xf32, #tpu.memory_space<vmem>>, %arg3: memref<1x32xf32, #tpu.memory_space<vmem>>, %arg4: memref<1x32x128xbf16, #tpu.memory_space<vmem>>, %arg5: memref<1x128xf32, #tpu.memory_space<vmem>>, %arg6: memref<64x32xbf16, #tpu.memory_space<vmem>>, %arg7: memref<1x32xf32, #tpu.memory_space<vmem>>, %arg8: memref<16x32xf32, #tpu.memory_space<vmem>>, %arg9: memref<16x32xbf16, #tpu.memory_space<vmem>>, %arg10: memref<16x32xf32, #tpu.memory_space<vmem>>) attributes {dimension_semantics = [#tpu.dimension_semantics<parallel>, #tpu.dimension_semantics<arbitrary>], iteration_bounds = array<i64: 1, 1>, scalar_prefetch = 0 : i64, scratch_operands = 2 : i64, tpu.core_type = #tpu.core_type<tc>, window_params = [{transform_indices = @transform_0, window_bounds = array<i64: 16, 32>}, {pipeline_mode = #tpu.pipeline_mode<synchronous>, transform_indices = @transform_1, window_bounds = array<i64: 1, 32>}, {transform_indices = @transform_2, window_bounds = array<i64: 1, 32, 128>}, {transform_indices = @transform_3, window_bounds = array<i64: 1, 128>}, {transform_indices = @transform_4, window_bounds = array<i64: 64, 32>}, {pipeline_mode = #tpu.pipeline_mode<synchronous>, transform_indices = @transform_5, window_bounds = array<i64: 1, 32>}, {transform_indices = @transform_6, window_bounds = array<i64: 16, 32>}]} {
    %c0_i32 = arith.constant 0 : i32
    %0 = arith.cmpi eq, %arg1, %c0_i32 : i32
    %1 = arith.extui %0 : i1 to i32
    %c0_i32_0 = arith.constant 0 : i32
    %2 = arith.cmpi ne, %1, %c0_i32_0 : i32
    scf.if %2 {
      %c0_19 = arith.constant 0 : index
      %c0_20 = arith.constant 0 : index
      %30 = vector.load %arg2[%c0_19, %c0_20] : memref<16x32xf32, #tpu.memory_space<vmem>>, vector<16x32xf32>
      %31 = arith.mulf %30, %30 : vector<16x32xf32>
      %cst_21 = arith.constant dense<0.000000e+00> : vector<16xf32>
      %32 = vector.multi_reduction <add>, %31, %cst_21 [1] : vector<16x32xf32> to vector<16xf32>
      %33 = vector.shape_cast %32 : vector<16xf32> to vector<16x1xf32>
      %cst_22 = arith.constant 3.200000e+01 : f32
      %34 = vector.broadcast %cst_22 : f32 to vector<16x1xf32>
      %35 = arith.divf %33, %34 : vector<16x1xf32>
      %cst_23 = arith.constant 1.1920929E-7 : f32
      %36 = vector.broadcast %cst_23 : f32 to vector<16x1xf32>
      %37 = arith.addf %35, %36 : vector<16x1xf32>
      %38 = math.rsqrt %37 : vector<16x1xf32>
      %39 = vector.broadcast %38 : vector<16x1xf32> to vector<16x32xf32>
      %40 = arith.mulf %30, %39 : vector<16x32xf32>
      %c0_24 = arith.constant 0 : index
      %c0_25 = arith.constant 0 : index
      %41 = vector.load %arg3[%c0_24, %c0_25] : memref<1x32xf32, #tpu.memory_space<vmem>>, vector<1x32xf32>
      %42 = vector.broadcast %41 : vector<1x32xf32> to vector<16x32xf32>
      %43 = arith.mulf %40, %42 : vector<16x32xf32>
      %44 = arith.truncf %43 : vector<16x32xf32> to vector<16x32xbf16>
      %c0_26 = arith.constant 0 : index
      %c0_27 = arith.constant 0 : index
      %45 = vector.load %arg9[%c0_26, %c0_27] : memref<16x32xbf16, #tpu.memory_space<vmem>>, vector<16x32xbf16>
      tpu.vector_store %arg9[%c0_26, %c0_27], %44 {strides = array<i32>} : memref<16x32xbf16, #tpu.memory_space<vmem>>, vector<16x32xbf16>,
      %cst_28 = arith.constant 0.000000e+00 : f32
      %46 = vector.broadcast %cst_28 : f32 to vector<16x32xf32>
      %c0_29 = arith.constant 0 : index
      %c0_30 = arith.constant 0 : index
      %47 = vector.load %arg10[%c0_29, %c0_30] : memref<16x32xf32, #tpu.memory_space<vmem>>, vector<16x32xf32>
      tpu.vector_store %arg10[%c0_29, %c0_30], %46 {strides = array<i32>} : memref<16x32xf32, #tpu.memory_space<vmem>>, vector<16x32xf32>,
    } else {
    }
    %c0 = arith.constant 0 : index
    %c0_1 = arith.constant 0 : index
    %3 = vector.load %arg9[%c0, %c0_1] : memref<16x32xbf16, #tpu.memory_space<vmem>>, vector<16x32xbf16>
    %c0_2 = arith.constant 0 : index
    %c0_3 = arith.constant 0 : index
    %c0_4 = arith.constant 0 : index
    %4 = vector.load %arg4[%c0_2, %c0_3, %c0_4] : memref<1x32x128xbf16, #tpu.memory_space<vmem>>, vector<1x32x128xbf16>
    %5 = vector.shape_cast %4 : vector<1x32x128xbf16> to vector<32x128xbf16>
    %cst = arith.constant dense<0.000000e+00> : vector<16x128xf32>
    %6 = tpu.matmul %3, %5, %cst {dimension_numbers = #tpu.dot_dimension_numbers<[1], [0], [0], [1], [0, 0, 1, 1], [], []>} : vector<16x32xbf16>, vector<32x128xbf16>, vector<16x128xf32> -> vector<16x128xf32>
    %c0_5 = arith.constant 0 : index
    %c0_6 = arith.constant 0 : index
    %7 = vector.load %arg5[%c0_5, %c0_6] : memref<1x128xf32, #tpu.memory_space<vmem>>, vector<1x128xf32>
    %8 = vector.broadcast %7 : vector<1x128xf32> to vector<16x128xf32>
    %9 = arith.addf %6, %8 : vector<16x128xf32>
    %10 = vector.extract_strided_slice %9 {offsets = [0, 0], sizes = [16, 64], strides = [1, 1]} : vector<16x128xf32> to vector<16x64xf32>
    %11 = vector.extract_strided_slice %9 {offsets = [0, 64], sizes = [16, 64], strides = [1, 1]} : vector<16x128xf32> to vector<16x64xf32>
    %12 = arith.mulf %10, %11 : vector<16x64xf32>
    %cst_7 = arith.constant 5.000000e-01 : f32
    %13 = vector.broadcast %cst_7 : f32 to vector<16x64xf32>
    %14 = arith.mulf %13, %12 : vector<16x64xf32>
    %cst_8 = arith.constant 1.41421354 : f32
    %15 = vector.broadcast %cst_8 : f32 to vector<16x64xf32>
    %16 = arith.divf %12, %15 : vector<16x64xf32>
    %17 = math.erf %16 : vector<16x64xf32>
    %cst_9 = arith.constant 1.000000e+00 : f32
    %18 = vector.broadcast %cst_9 : f32 to vector<16x64xf32>
    %19 = arith.addf %18, %17 : vector<16x64xf32>
    %20 = arith.mulf %14, %19 : vector<16x64xf32>
    %c0_10 = arith.constant 0 : index
    %c0_11 = arith.constant 0 : index
    %21 = vector.load %arg10[%c0_10, %c0_11] : memref<16x32xf32, #tpu.memory_space<vmem>>, vector<16x32xf32>
    %22 = arith.truncf %20 : vector<16x64xf32> to vector<16x64xbf16>
    %c0_12 = arith.constant 0 : index
    %c0_13 = arith.constant 0 : index
    %23 = vector.load %arg6[%c0_12, %c0_13] : memref<64x32xbf16, #tpu.memory_space<vmem>>, vector<64x32xbf16>
    %cst_14 = arith.constant dense<0.000000e+00> : vector<16x32xf32>
    %24 = tpu.matmul %22, %23, %cst_14 {dimension_numbers = #tpu.dot_dimension_numbers<[1], [0], [0], [1], [0, 0, 1, 1], [], []>} : vector<16x64xbf16>, vector<64x32xbf16>, vector<16x32xf32> -> vector<16x32xf32>
    %25 = arith.addf %21, %24 : vector<16x32xf32>
    %c0_15 = arith.constant 0 : index
    %c0_16 = arith.constant 0 : index
    %26 = vector.load %arg10[%c0_15, %c0_16] : memref<16x32xf32, #tpu.memory_space<vmem>>, vector<16x32xf32>
    tpu.vector_store %arg10[%c0_15, %c0_16], %25 {strides = array<i32>} : memref<16x32xf32, #tpu.memory_space<vmem>>, vector<16x32xf32>,
    %c0_i32_17 = arith.constant 0 : i32
    %27 = arith.cmpi eq, %arg1, %c0_i32_17 : i32
    %28 = arith.extui %27 : i1 to i32
    %c0_i32_18 = arith.constant 0 : i32
    %29 = arith.cmpi ne, %28, %c0_i32_18 : i32
    scf.if %29 {
      %c0_19 = arith.constant 0 : index
      %c0_20 = arith.constant 0 : index
      %30 = vector.load %arg2[%c0_19, %c0_20] : memref<16x32xf32, #tpu.memory_space<vmem>>, vector<16x32xf32>
      %c0_21 = arith.constant 0 : index
      %c0_22 = arith.constant 0 : index
      %31 = vector.load %arg10[%c0_21, %c0_22] : memref<16x32xf32, #tpu.memory_space<vmem>>, vector<16x32xf32>
      %32 = arith.addf %30, %31 : vector<16x32xf32>
      %c0_23 = arith.constant 0 : index
      %c0_24 = arith.constant 0 : index
      %33 = vector.load %arg7[%c0_23, %c0_24] : memref<1x32xf32, #tpu.memory_space<vmem>>, vector<1x32xf32>
      %34 = vector.broadcast %33 : vector<1x32xf32> to vector<16x32xf32>
      %35 = arith.addf %32, %34 : vector<16x32xf32>
      %c0_25 = arith.constant 0 : index
      %c0_26 = arith.constant 0 : index
      %36 = vector.load %arg8[%c0_25, %c0_26] : memref<16x32xf32, #tpu.memory_space<vmem>>, vector<16x32xf32>
      tpu.vector_store %arg8[%c0_25, %c0_26], %35 {strides = array<i32>} : memref<16x32xf32, #tpu.memory_space<vmem>>, vector<16x32xf32>,
    } else {
    }
    return
  }
  func.func @transform_0(%arg0: i32, %arg1: i32) -> (i32, i32) {
    %c0_i32 = arith.constant 0 : i32
    %c0_i32_0 = arith.constant 0 : i32
    return %arg0, %c0_i32 : i32, i32
  }
  func.func @transform_1(%arg0: i32, %arg1: i32) -> (i32, i32) {
    %c0_i32 = arith.constant 0 : i32
    %c0_i32_0 = arith.constant 0 : i32
    %c0_i32_1 = arith.constant 0 : i32
    return %c0_i32, %c0_i32_0 : i32, i32
  }
  func.func @transform_2(%arg0: i32, %arg1: i32) -> (i32, i32, i32) {
    %c0_i32 = arith.constant 0 : i32
    %c0_i32_0 = arith.constant 0 : i32
    %c0_i32_1 = arith.constant 0 : i32
    return %arg1, %c0_i32, %c0_i32_0 : i32, i32, i32
  }
  func.func @transform_3(%arg0: i32, %arg1: i32) -> (i32, i32) {
    %c0_i32 = arith.constant 0 : i32
    %c0_i32_0 = arith.constant 0 : i32
    return %c0_i32, %arg1 : i32, i32
  }
  func.func @transform_4(%arg0: i32, %arg1: i32) -> (i32, i32) {
    %c0_i32 = arith.constant 0 : i32
    %c0_i32_0 = arith.constant 0 : i32
    return %arg1, %c0_i32 : i32, i32
  }
  func.func @transform_5(%arg0: i32, %arg1: i32) -> (i32, i32) {
    %c0_i32 = arith.constant 0 : i32
    %c0_i32_0 = arith.constant 0 : i32
    %c0_i32_1 = arith.constant 0 : i32
    return %c0_i32, %c0_i32_0 : i32, i32
  }
  func.func @transform_6(%arg0: i32, %arg1: i32) -> (i32, i32) {
    %c0_i32 = arith.constant 0 : i32
    %c0_i32_0 = arith.constant 0 : i32
    return %arg0, %c0_i32 : i32, i32
  }
}

</mosaic_0001>

<llo_original>
// kernel: transformer_mlp_forward.1
$region0: #{transformer_mlp_forward.1}
  #allocation0 [shape = 'u32[]', space=smem, size = 0x4, offset = 0x4, fixed_abs, tag = 'smem constant byte address 0x4 - core index']
  #allocation1 [shape = 'u32[144,128]{1,0:T(1,128)}', space=vmem, size = 0x12000, scoped, tag = 'internal scratch']
  #allocation2 [shape = 'bf16[16,32]{1,0:T(16,128)(2,1)}', space=vmem, size = 0x1000, scoped, tag = 'scratch operand']
  #allocation3 [shape = 'f32[16,32]{1,0:T(8,128)}', space=vmem, size = 0x2000, scoped, tag = 'scratch operand']
  %s0 = inlined_call_operand.vmem [shape: f32[16,32], index: 0, kind: input, shape index: {}]
  %s1 = inlined_call_operand.vmem [shape: f32[1,32], index: 1, kind: input, shape index: {}]
  %s2 = inlined_call_operand.vmem [shape: bf16[1,32,128], index: 2, kind: input, shape index: {}]
  %s3 = inlined_call_operand.vmem [shape: f32[1,128], index: 3, kind: input, shape index: {}]
  %s4 = inlined_call_operand.vmem [shape: bf16[64,32], index: 4, kind: input, shape index: {}]
  %s5 = inlined_call_operand.vmem [shape: f32[1,32], index: 5, kind: input, shape index: {}]
  %s6 = inlined_call_operand.hbm [shape: f32[16,32], index: 6, kind: output, shape index: {}]
  %s7 = sld [smem:[#allocation0]]
  $region42: #{transformer_mlp_forward.1} parent=0
    _
  %s9 = ssub.s32 1, %s7
  %s10 = scalar_select 0, %s9, %s7
  $region1: #{transformer_mlp_forward.1} parent=0
    #allocation4 [shape = 'u8[8192]{0}', space=vmem, size = 0x2000, scoped, tag = 'output window, operand 0, single buffered']
    #allocation5 [shape = 's32[1]{0}', space=sflag, size = 0x4, scoped, tag = 'scoped memory for transformer_mlp_forward.1']
    %11 = vsyncpa [#allocation5], 0
    // Predicated region
    $region2: #{transformer_mlp_forward.1} parent=1 // pred_check
      _
    $region3: #{transformer_mlp_forward.1} parent=1 // pred_check_branch
      %13 = sbr.rel (0) target = $region5
    $region4: #{transformer_mlp_forward.1} parent=1 // pred_region
      _
    $region5: #{transformer_mlp_forward.1} parent=1 // pred_fallthru
      _
    // Predicated region
    $region6: #{transformer_mlp_forward.1} parent=1 // pred_check
      _
    $region7: #{transformer_mlp_forward.1} parent=1 // pred_check_branch
      %15 = sbr.rel (0) target = $region9
    $region8: #{transformer_mlp_forward.1} parent=1 // pred_region
      _
    $region9: #{transformer_mlp_forward.1} parent=1 // pred_fallthru
      _
    // Predicated region
    $region10: #{transformer_mlp_forward.1} parent=1 // pred_check
      _
    $region11: #{transformer_mlp_forward.1} parent=1 // pred_check_branch
      %17 = sbr.rel (0) target = $region13
    $region12: #{transformer_mlp_forward.1} parent=1 // pred_region
      _
    $region13: #{transformer_mlp_forward.1} parent=1 // pred_fallthru
      _
    // Predicated region
    $region14: #{transformer_mlp_forward.1} parent=1 // pred_check
      _
    $region15: #{transformer_mlp_forward.1} parent=1 // pred_check_branch
      %19 = sbr.rel (0) target = $region17
    $region16: #{transformer_mlp_forward.1} parent=1 // pred_region
      _
    $region17: #{transformer_mlp_forward.1} parent=1 // pred_fallthru
      _
    // Predicated region
    $region18: #{transformer_mlp_forward.1} parent=1 // pred_check
      _
    $region19: #{transformer_mlp_forward.1} parent=1 // pred_check_branch
      %21 = sbr.rel (0) target = $region21
    $region20: #{transformer_mlp_forward.1} parent=1 // pred_region
      _
    $region21: #{transformer_mlp_forward.1} parent=1 // pred_fallthru
      _
    // Predicated region
    $region22: #{transformer_mlp_forward.1} parent=1 // pred_check
      _
    $region23: #{transformer_mlp_forward.1} parent=1 // pred_check_branch
      %23 = sbr.rel (0) target = $region25
    $region24: #{transformer_mlp_forward.1} parent=1 // pred_region
      _
    $region25: #{transformer_mlp_forward.1} parent=1 // pred_fallthru
      _
    %p25 = scmp.eq.s32.totalorder 0, 0
    // Predicated region
    $region26: #{transformer_mlp_forward.1} parent=1 // pred_check
      %p26 = pneg %p25
    $region27: #{transformer_mlp_forward.1} parent=1 // pred_check_branch
      %28 = sbr.rel (%p26) target = $region29
    $region28: #{transformer_mlp_forward.1} parent=1 // pred_region
      %v29 = vld [vmem:[%s0] sm:$0xff]
      %v30 = vld [vmem:[%s0 + $0x8] sm:$0xff]
      %v31 = vmul.f32 %v29, %v29
      %v32 = vmul.f32 %v30, %v30
      %vm33 = vcmask 261120
      %v34 = vsel %vm33, %v31, 0.0
      %35 = vadd.xlane.f32.xlu0 %v34
      %v36 = vpop.xlane.xlu0 %35
      %v37 = vsel %vm33, %v32, 0.0
      %38 = vadd.xlane.f32.xlu0 %v37
      %v39 = vpop.xlane.xlu0 %38
      %v40 = vrcp.pop 32.0
      %v41 = vmul.f32 %v36, %v40
      %v42 = vmul.f32 %v39, %v40
      %v43 = vadd.f32 %v41, 1.1920929e-07
      %v44 = vadd.f32 %v42, 1.1920929e-07
      %v45 = vrsqrt.pop %v43
      %v46 = vrsqrt.pop %v44
      %v47 = vmul.f32 %v29, %v45
      %v48 = vmul.f32 %v30, %v46
      %v49 = vld [vmem:[%s1] sm:$0x1]
      %v51 = vlaneseq
      %v52 = vshrl.u32 %v51, 7
      %v53 = vsub.s32 0, %v52
      %v54 = vrot.slane %v49, %v53
      %v56 = vmul.f32 %v47, %v54
      %v57 = vmul.f32 %v48, %v54
      %v58 = vpack.c.bf16 %v57, %v56
      %59 = vst.msk [vmem:[#allocation2] sm:$0xff] %vm33, %v58
      %60 = vst.msk [vmem:[#allocation3] sm:$0xff] %vm33, 0.0
      %61 = vst.msk [vmem:[#allocation3 + $0x8] sm:$0xff] %vm33, 0.0
    $region29: #{transformer_mlp_forward.1} parent=1 // pred_fallthru
      _
    %v62 = vld [vmem:[#allocation2] sm:$0xff]
    %v63 = vld [vmem:[%s2] sm:$0xf]
    %v64 = vld [vmem:[%s2 + $0x4] sm:$0xf]
    %v65 = vld [vmem:[%s2 + $0x8] sm:$0xf]
    %v66 = vld [vmem:[%s2 + $0xc] sm:$0xf]
    %v67 = vld [vmem:[%s3] sm:$0x1]
    %v69 = vlaneseq
    %v70 = vshrl.u32 %v69, 7
    %v71 = vsub.s32 0, %v70
    %v72 = vrot.slane %v67, %v71
    %v78 = vunpack.c.l.b16 %v63
    %v79 = vunpack.c.l.b16 %v64
    %v80 = vunpack.c.l.b16 %v65
    %v81 = vunpack.c.l.b16 %v66
    %v82 = vpack.c.b16 %v79, %v78
    %v83 = vpack.c.b16 %v81, %v80
    %vm86 = vcmask 261120
    %v88 = vsel %vm86, %v62, 0
    %90 = vmatprep.subr.bf16.mxu0 0
    %91 = vmatpush1.bf16.msra.mxu0 %v82
    %92 = vmatprep.subr.bf16.mxu0 0
    %93 = vmatpush1.bf16.msra.mxu0 %v83
    %94 = vmatprep.subr.bf16.mxu0 0
    %95 = vmatpush1.bf16.msra.mxu0 0
    %96 = vmatprep.subr.bf16.mxu0 0
    %97 = vmatpush1.bf16.msra.mxu0 0
    %98 = vmatprep.subr.bf16.mxu0 0
    %99 = vmatpush1.bf16.msra.mxu0 0
    %100 = vmatprep.subr.bf16.mxu0 0
    %101 = vmatpush1.bf16.msra.mxu0 0
    %102 = vmatprep.subr.bf16.mxu0 0
    %103 = vmatpush1.bf16.msra.mxu0 0
    %104 = vmatprep.subr.bf16.mxu0 0
    %105 = vmatpush1.bf16.msra.mxu0 0
    %106 = vmatprep.subr.bf16.mxu0 0
    %107 = vmatpush1.bf16.msra.mxu0 0
    %108 = vmatprep.subr.bf16.mxu0 0
    %109 = vmatpush1.bf16.msra.mxu0 0
    %110 = vmatprep.subr.bf16.mxu0 0
    %111 = vmatpush1.bf16.msra.mxu0 0
    %112 = vmatprep.subr.bf16.mxu0 0
    %113 = vmatpush1.bf16.msra.mxu0 0
    %114 = vmatprep.subr.bf16.mxu0 0
    %115 = vmatpush1.bf16.msra.mxu0 0
    %116 = vmatprep.subr.bf16.mxu0 0
    %117 = vmatpush1.bf16.msra.mxu0 0
    %118 = vmatprep.subr.bf16.mxu0 0
    %119 = vmatpush1.bf16.msra.mxu0 0
    %120 = vmatprep.subr.bf16.mxu0 0
    %121 = vmatpush1.bf16.msra.mxu0 0
    %122 = vmatprep.mubr.bf16.mxu0 0
    %123 = vmatmul.mubr.bf16.gmra.mrb[0].mxu0 %v88
    %v124 = vpop.f32.mrb[0].mxu0
    %v125 = vadd.f32 %v72, %v124
    %v126 = vpop.f32.mrb[0].mxu0
    %v127 = vpop.f32.mrb[0].mxu0
    %v128 = vadd.f32 %v72, %v127
    %v129 = vpop.f32.mrb[0].mxu0
    %130 = vdwg.mxu0
    %133 = vrot.lane.b32.xlu0 %v125, 64
    %v134 = vpop.permute.xlu0 %133
    %135 = vrot.lane.b32.xlu0 %v128, 64
    %v136 = vpop.permute.xlu0 %135
    %v139 = vmul.f32 %v125, %v134
    %v140 = vmul.f32 %v128, %v136
    %v141 = vmul.f32 %v139, 0.5
    %v142 = vmul.f32 %v140, 0.5
    %v143 = vrcp.pop 1.4142135
    %v144 = vmul.f32 %v139, %v143
    %v145 = vmul.f32 %v140, %v143
    %v146 = verf.f32.pop %v144
    %v147 = verf.f32.pop %v145
    %v148 = vadd.f32 %v146, 1.0
    %v149 = vadd.f32 %v147, 1.0
    %v150 = vmul.f32 %v141, %v148
    %v151 = vmul.f32 %v142, %v149
    %v152 = vld [vmem:[#allocation3] sm:$0xff]
    %v153 = vld [vmem:[#allocation3 + $0x8] sm:$0xff]
    %v154 = vpack.c.bf16 %v151, %v150
    %v155 = vld [vmem:[%s4] sm:$0xf]
    %v156 = vld [vmem:[%s4 + $0x4] sm:$0xf]
    %v157 = vld [vmem:[%s4 + $0x8] sm:$0xf]
    %v158 = vld [vmem:[%s4 + $0xc] sm:$0xf]
    %v159 = vld [vmem:[%s4 + $0x10] sm:$0xf]
    %v160 = vld [vmem:[%s4 + $0x14] sm:$0xf]
    %v161 = vld [vmem:[%s4 + $0x18] sm:$0xf]
    %v162 = vld [vmem:[%s4 + $0x1c] sm:$0xf]
    %v171 = vunpack.c.l.b16 %v155
    %v172 = vunpack.c.l.b16 %v156
    %v173 = vunpack.c.l.b16 %v157
    %v174 = vunpack.c.l.b16 %v158
    %v175 = vunpack.c.l.b16 %v159
    %v176 = vunpack.c.l.b16 %v160
    %v177 = vunpack.c.l.b16 %v161
    %v178 = vunpack.c.l.b16 %v162
    %v179 = vpack.c.b16 %v172, %v171
    %v180 = vpack.c.b16 %v174, %v173
    %v181 = vpack.c.b16 %v176, %v175
    %v182 = vpack.c.b16 %v178, %v177
    %vm187 = vcmask 523264
    %v189 = vsel %vm187, %v154, 0
    %191 = vmatprep.subr.bf16.mxu0 0
    %192 = vmatpush1.bf16.msra.mxu0 %v179
    %193 = vmatprep.subr.bf16.mxu0 0
    %194 = vmatpush1.bf16.msra.mxu0 %v180
    %195 = vmatprep.subr.bf16.mxu0 0
    %196 = vmatpush1.bf16.msra.mxu0 %v181
    %197 = vmatprep.subr.bf16.mxu0 0
    %198 = vmatpush1.bf16.msra.mxu0 %v182
    %199 = vmatprep.subr.bf16.mxu0 0
    %200 = vmatpush1.bf16.msra.mxu0 0
    %201 = vmatprep.subr.bf16.mxu0 0
    %202 = vmatpush1.bf16.msra.mxu0 0
    %203 = vmatprep.subr.bf16.mxu0 0
    %204 = vmatpush1.bf16.msra.mxu0 0
    %205 = vmatprep.subr.bf16.mxu0 0
    %206 = vmatpush1.bf16.msra.mxu0 0
    %207 = vmatprep.subr.bf16.mxu0 0
    %208 = vmatpush1.bf16.msra.mxu0 0
    %209 = vmatprep.subr.bf16.mxu0 0
    %210 = vmatpush1.bf16.msra.mxu0 0
    %211 = vmatprep.subr.bf16.mxu0 0
    %212 = vmatpush1.bf16.msra.mxu0 0
    %213 = vmatprep.subr.bf16.mxu0 0
    %214 = vmatpush1.bf16.msra.mxu0 0
    %215 = vmatprep.subr.bf16.mxu0 0
    %216 = vmatpush1.bf16.msra.mxu0 0
    %217 = vmatprep.subr.bf16.mxu0 0
    %218 = vmatpush1.bf16.msra.mxu0 0
    %219 = vmatprep.subr.bf16.mxu0 0
    %220 = vmatpush1.bf16.msra.mxu0 0
    %221 = vmatprep.subr.bf16.mxu0 0
    %222 = vmatpush1.bf16.msra.mxu0 0
    %223 = vmatprep.mubr.bf16.mxu0 0
    %224 = vmatmul.mubr.bf16.gmra.mrb[0].mxu0 %v189
    %v225 = vpop.f32.mrb[0].mxu0
    %v226 = vadd.f32 0.0, %v225
    %v227 = vpop.f32.mrb[0].mxu0
    %v228 = vpop.f32.mrb[0].mxu0
    %v229 = vadd.f32 0.0, %v228
    %v230 = vpop.f32.mrb[0].mxu0
    %231 = vdwg.mxu0
    %v232 = vadd.f32 %v152, %v226
    %v233 = vadd.f32 %v153, %v229
    %234 = vst.msk [vmem:[#allocation3] sm:$0xff] %vm86, %v232
    %235 = vst.msk [vmem:[#allocation3 + $0x8] sm:$0xff] %vm86, %v233
    // Predicated region
    $region30: #{transformer_mlp_forward.1} parent=1 // pred_check
      %p236 = pneg %p25
    $region31: #{transformer_mlp_forward.1} parent=1 // pred_check_branch
      %238 = sbr.rel (%p236) target = $region33
    $region32: #{transformer_mlp_forward.1} parent=1 // pred_region
      %v239 = vld [vmem:[%s0] sm:$0xff]
      %v240 = vld [vmem:[%s0 + $0x8] sm:$0xff]
      %v241 = vld [vmem:[#allocation3] sm:$0xff]
      %v242 = vld [vmem:[#allocation3 + $0x8] sm:$0xff]
      %v243 = vadd.f32 %v239, %v241
      %v244 = vadd.f32 %v240, %v242
      %v245 = vld [vmem:[%s5] sm:$0x1]
      %v247 = vlaneseq
      %v248 = vshrl.u32 %v247, 7
      %v249 = vsub.s32 0, %v248
      %v250 = vrot.slane %v245, %v249
      %v252 = vadd.f32 %v243, %v250
      %v253 = vadd.f32 %v244, %v250
      %254 = vst.msk [vmem:[#allocation4] sm:$0xff] %vm86, %v252
      %255 = vst.msk [vmem:[#allocation4 + $0x8] sm:$0xff] %vm86, %v253
    $region33: #{transformer_mlp_forward.1} parent=1 // pred_fallthru
      _
    // Predicated region
    $region34: #{transformer_mlp_forward.1} parent=1 // pred_check
      _
    $region35: #{transformer_mlp_forward.1} parent=1 // pred_check_branch
      %257 = sbr.rel (0) target = $region37
    $region36: #{transformer_mlp_forward.1} parent=1 // pred_region
      %s259 = ssub.s32 256, 256
      %260 = vsyncadd [#allocation5], %s259
      %s261 = sshll.u32 [#allocation4], 4
      %s262 = int_to_ptr.vmem [resolvable:$true] %s261
      %267 = dma.vmem_to_hbm [thread:$0]  %s262, 256, %s6, [#allocation5], 128, 128, 8
    $region37: #{transformer_mlp_forward.1} parent=1 // pred_fallthru
      _
    // Predicated region
    $region38: #{transformer_mlp_forward.1} parent=1 // pred_check
      _
    $region39: #{transformer_mlp_forward.1} parent=1 // pred_check_branch
      %269 = sbr.rel (0) target = $region41
    $region40: #{transformer_mlp_forward.1} parent=1 // pred_region
      %270 = dma.done [#allocation5], 256
    $region41: #{transformer_mlp_forward.1} parent=1 // pred_fallthru
      _
    %271 = vsyncpa [#allocation5], 1

</llo_original>
